<compile_context>
chip_gen: v7x
topology: tpu7x:2x2x1
jax: 0.10.0
libtpu: 0.0.40
codegen_flags: <defaults>
</compile_context>

<pallas_src>
import math

import jax
import jax.numpy as jnp
from jax.experimental import pallas as pl
from jax.experimental.pallas import tpu as pltpu

# Small synthetic config (SiglipVisionConfig analog).
B = 2              # batch
S = 8              # sequence length (num patches)
H = 32             # hidden_size
NUM_HEADS = 4      # num_attention_heads
HEAD_DIM = H // NUM_HEADS
INTER = 64         # intermediate_size
LN_EPS = 1e-6      # layer_norm_eps
# hidden_act = "gelu_pytorch_tanh" (SigLIP default)

LANE = 128
HP = ((H + LANE - 1) // LANE) * LANE       # padded hidden (128)
IP = ((INTER + LANE - 1) // LANE) * LANE   # padded intermediate (128)
INV_H = 1.0 / float(H)

# Column layout of the packed weight slab (HP rows). All offsets are 128-aligned.
_W_KV = 0              # [Wk_t | Wv_t]      width 2*HP
_W_Q = 2 * HP          # replicated q-mat    width HP
_W_O = 3 * HP          # Wo_t                width HP
_W_1 = 4 * HP          # fc1 weight          width IP
_W_COLS = 4 * HP + IP

# Column layout of the packed bias row (1 row). All offsets are 128-aligned.
_B_KV = 0              # [bk | bv]           width 2*HP
_B_O = 2 * HP
_B_LNW = 3 * HP
_B_LNB = 4 * HP
_B_1 = 5 * HP          # width IP
_B_2 = 5 * HP + IP
_B_COLS = 6 * HP + IP


def _gelu_tanh(x):
    c = 0.7978845608028654  # sqrt(2/pi)
    return 0.5 * x * (1.0 + jnp.tanh(c * (x + 0.044715 * x * x * x)))


def pooling_head_kernel(x_ref, w_ref, w2_ref, b_ref, msel_ref, out_ref):
    # x_ref:    (tile_b*S, HP)  hidden states (zero-padded lanes beyond H)
    # w_ref:    (HP, _W_COLS)   [Wk_t|Wv_t | Qmat | Wo_t | W1]   (128-aligned fields)
    # w2_ref:   (IP, HP)        fc2 weight
    # b_ref:    (1, _B_COLS)    [bk|bv | bo | ln_w | ln_b | b1 | b2]
    # msel_ref: (tile_b, tile_b*S)  batch-selection matrix (1 where row belongs to batch)
    # out_ref:  (tile_b, HP)    lane-dense output tile
    x = x_ref[...]
    msel = msel_ref[...]

    w_kv = w_ref[:, _W_KV:_W_KV + 2 * HP]
    qmat = w_ref[:, _W_Q:_W_Q + HP]
    wo = w_ref[:, _W_O:_W_O + HP]
    w1 = w_ref[:, _W_1:_W_1 + IP]

    b_kv = b_ref[:, _B_KV:_B_KV + 2 * HP]
    bo = b_ref[:, _B_O:_B_O + HP]
    lnw = b_ref[:, _B_LNW:_B_LNW + HP]
    lnb = b_ref[:, _B_LNB:_B_LNB + HP]
    b1 = b_ref[:, _B_1:_B_1 + IP]
    b2 = b_ref[:, _B_2:_B_2 + HP]

    # Fused K/V projection: one MXU pass over all batch rows.
    kv = jnp.dot(x, w_kv, preferred_element_type=jnp.float32) + b_kv   # (R, 2*HP)
    k = kv[:, :HP]                                                     # 128-aligned views
    v = kv[:, HP:]

    # Per-head attention scores, replicated across each head's columns.
    # qmat has probe-q projection, its bias and 1/sqrt(head_dim) folded in,
    # and is block-structured so s[r, c] = score(row r, head(c)).
    s = jnp.dot(k, qmat, preferred_element_type=jnp.float32)           # (R, HP)

    # Softmax over the S keys of every batch at once (no per-batch loop).
    # Column-wise max is constant within each (head) column -> valid stabilizer,
    # and it cancels exactly in num/den.
    gmax = jnp.max(s, axis=0, keepdims=True)
    e = jnp.exp(s - gmax)                                              # (R, HP)
    num = jnp.dot(msel, e * v, preferred_element_type=jnp.float32)     # (tile_b, HP)
    den = jnp.dot(msel, e, preferred_element_type=jnp.float32)         # (tile_b, HP)
    ctx = num * pl.reciprocal(den, approx=True)                        # softmax-weighted V

    # Output projection (all heads fused).
    attn = jnp.dot(ctx, wo, preferred_element_type=jnp.float32) + bo   # (tile_b, HP)
    residual = attn

    # LayerNorm over the real hidden dim (padded lanes of attn are exactly 0,
    # so E[x] / E[x^2] sums over the full tile are correct with 1/H scaling).
    mean = jnp.sum(attn, axis=-1, keepdims=True) * INV_H
    msq = jnp.sum(attn * attn, axis=-1, keepdims=True) * INV_H
    var = msq - mean * mean
    normed = (attn - mean) * jax.lax.rsqrt(var + LN_EPS) * lnw + lnb   # pad lanes -> 0

    # SiglipMLP: fc1 -> gelu(tanh) -> fc2
    h1 = jnp.dot(normed, w1, preferred_element_type=jnp.float32) + b1
    h1 = _gelu_tanh(h1)
    h2 = jnp.dot(h1, w2_ref[...], preferred_element_type=jnp.float32) + b2

    # Lane-dense store (tile_b, 128); wrapper slices the first H columns.
    out_ref[...] = (h2 + residual).astype(out_ref.dtype)


def siglip_pooling_head(x, w_slab, w2, b_slab, *, tile_b=None):
    bsz, seq, hid = x.shape
    if tile_b is None:
        # Toy config: whole batch in one grid step. For real SigLIP shapes use
        # a multiple of 8 so every out/x block satisfies the (8,128) rule and
        # batch tiles stream double-buffered while the weight slabs stay resident.
        tile_b = bsz
    assert bsz % tile_b == 0
    nb = bsz // tile_b

    x2d = x.reshape(bsz * seq, hid)
    x2d = jnp.pad(x2d, ((0, 0), (0, HP - hid))).astype(w_slab.dtype)

    # Batch-selection matrix for one tile: msel[b, r] = 1 iff row r belongs to batch b.
    row_b = jnp.arange(tile_b * seq) // seq
    msel = (row_b[None, :] == jnp.arange(tile_b)[:, None]).astype(jnp.float32)

    out = pl.pallas_call(
        pooling_head_kernel,
        out_shape=jax.ShapeDtypeStruct((bsz, HP), jnp.float32),
        grid_spec=pltpu.PrefetchScalarGridSpec(
            num_scalar_prefetch=0,
            grid=(nb,),
            in_specs=[
                pl.BlockSpec((tile_b * seq, HP), lambda i: (i, 0)),   # x: tiled over batch
                pl.BlockSpec(w_slab.shape, lambda i: (0, 0)),         # weights: VMEM-resident
                pl.BlockSpec(w2.shape, lambda i: (0, 0)),
                pl.BlockSpec(b_slab.shape, lambda i: (0, 0)),
                pl.BlockSpec(msel.shape, lambda i: (0, 0)),
            ],
            out_specs=pl.BlockSpec((tile_b, HP), lambda i: (i, 0)),
        ),
        compiler_params=pltpu.CompilerParams(
            dimension_semantics=("parallel",)),
    )(x2d, w_slab, w2, b_slab, msel)
    return out[:, :hid]


siglip_pooling_head_jit = jax.jit(siglip_pooling_head)


# ---------------- JAX glue: re-layout canonical PyTorch params ----------------
def _pad2(a, rows, cols):
    return jnp.pad(a, ((0, rows - a.shape[0]), (0, cols - a.shape[1])))


def pack_params(p):
    wq_t = p["in_proj_weight"][:H].T                    # (H, H)
    wk_t = p["in_proj_weight"][H:2 * H].T
    wv_t = p["in_proj_weight"][2 * H:].T
    bq = p["in_proj_bias"][:H]
    bk = p["in_proj_bias"][H:2 * H].reshape(1, H)
    bv = p["in_proj_bias"][2 * H:].reshape(1, H)

    # Hoisted (batch-invariant) query projection; fold bias + 1/sqrt(d) scale
    # into a block-structured (H, H) matrix so per-head scores (replicated over
    # each head's columns) come from ONE full-width matmul K @ qmat.
    q = p["probe"].reshape(1, H) @ wq_t + bq            # (1, H)
    scale = 1.0 / math.sqrt(HEAD_DIM)
    head_of = jnp.arange(H) // HEAD_DIM
    same_head = (head_of[:, None] == head_of[None, :])
    qmat = jnp.where(same_head, (q[0] * scale)[:, None], 0.0)          # (H, H)

    wo_t = p["out_proj_weight"].T                       # (H, H)
    w1 = p["fc1_weight"].T                              # (H, INTER)
    w2 = p["fc2_weight"].T                              # (INTER, H)

    # Every field padded to a 128-lane multiple and concatenated at
    # 128-aligned column offsets -> zero-cost slices inside the kernel.
    w_slab = jnp.concatenate([
        _pad2(wk_t, HP, HP), _pad2(wv_t, HP, HP),       # fused K|V projection
        _pad2(qmat, HP, HP),
        _pad2(wo_t, HP, HP),
        _pad2(w1, HP, IP),
    ], axis=1)                                          # (HP, _W_COLS)

    b_slab = jnp.concatenate([
        _pad2(bk, 1, HP), _pad2(bv, 1, HP),
        _pad2(p["out_proj_bias"].reshape(1, H), 1, HP),
        _pad2(p["ln_weight"].reshape(1, H), 1, HP),     # pad lanes = 0 -> normed pad = 0
        _pad2(p["ln_bias"].reshape(1, H), 1, HP),
        _pad2(p["fc1_bias"].reshape(1, INTER), 1, IP),
        _pad2(p["fc2_bias"].reshape(1, H), 1, HP),
    ], axis=1)                                          # (1, _B_COLS)

    w2_pad = _pad2(w2, IP, HP)                          # (IP, HP)
    return w_slab, w2_pad, b_slab


# ---------------- pure-JAX reference (canonical PyTorch param layout) ---------
def ref_forward(x, p):
    bsz = x.shape[0]
    probe = jnp.broadcast_to(p["probe"], (bsz, 1, H))
    wq_t = p["in_proj_weight"][:H].T
    wk_t = p["in_proj_weight"][H:2 * H].T
    wv_t = p["in_proj_weight"][2 * H:].T
    bq, bk, bv = p["in_proj_bias"][:H], p["in_proj_bias"][H:2 * H], p["in_proj_bias"][2 * H:]
    q = probe @ wq_t + bq
    k = x @ wk_t + bk
    v = x @ wv_t + bv
    qh = q.reshape(bsz, 1, NUM_HEADS, HEAD_DIM)
    kh = k.reshape(bsz, S, NUM_HEADS, HEAD_DIM)
    vh = v.reshape(bsz, S, NUM_HEADS, HEAD_DIM)
    scores = jnp.einsum("bqhd,bkhd->bhqk", qh, kh) / math.sqrt(HEAD_DIM)
    w = jax.nn.softmax(scores, axis=-1)
    ctx = jnp.einsum("bhqk,bkhd->bqhd", w, vh).reshape(bsz, 1, H)
    attn = ctx @ p["out_proj_weight"].T + p["out_proj_bias"]
    residual = attn
    mean = attn.mean(-1, keepdims=True)
    var = ((attn - mean) ** 2).mean(-1, keepdims=True)
    normed = (attn - mean) / jnp.sqrt(var + LN_EPS) * p["ln_weight"] + p["ln_bias"]
    h1 = _gelu_tanh(normed @ p["fc1_weight"].T + p["fc1_bias"])
    h2 = h1 @ p["fc2_weight"].T + p["fc2_bias"]
    out = h2 + residual
    return out[:, 0]


if __name__ == "__main__":
    key = jax.random.PRNGKey(0)
    ks = jax.random.split(key, 12)
    sc = 0.05
    f32 = jnp.float32

    x = jax.random.normal(ks[0], (B, S, H), f32)

    # Canonical (PyTorch-shaped) parameters, deterministic.
    params = {
        "probe": jax.random.normal(ks[1], (1, 1, H), f32),
        "in_proj_weight": sc * jax.random.normal(ks[2], (3 * H, H), f32),
        "in_proj_bias": sc * jax.random.normal(ks[3], (3 * H,), f32),
        "out_proj_weight": sc * jax.random.normal(ks[4], (H, H), f32),
        "out_proj_bias": sc * jax.random.normal(ks[5], (H,), f32),
        "ln_weight": 1.0 + 0.1 * jax.random.normal(ks[6], (H,), f32),
        "ln_bias": sc * jax.random.normal(ks[7], (H,), f32),
        "fc1_weight": sc * jax.random.normal(ks[8], (INTER, H), f32),
        "fc1_bias": sc * jax.random.normal(ks[9], (INTER,), f32),
        "fc2_weight": sc * jax.random.normal(ks[10], (H, INTER), f32),
        "fc2_bias": sc * jax.random.normal(ks[11], (H,), f32),
    }

    w_slab, w2_pad, b_slab = pack_params(params)

    out = siglip_pooling_head_jit(x, w_slab, w2_pad, b_slab)
    out = jax.block_until_ready(out)

    ref = ref_forward(x, params)
    assert out.shape == (B, H)
    # Tolerance covers the approx-EUP reciprocal used for softmax normalization.
    assert jnp.allclose(out, ref, atol=1e-2, rtol=1e-2), (
        "max abs diff %e" % float(jnp.max(jnp.abs(out - ref))))
    print("KERNEL_OK")
</pallas_src>

<mosaic_0001>
module attributes {stable_mosaic.version = 11 : i64} {
  func.func @pooling_head_kernel(%arg0: i32, %arg1: memref<16x128xf32, #tpu.memory_space<vmem>>, %arg2: memref<128x640xf32, #tpu.memory_space<vmem>>, %arg3: memref<128x128xf32, #tpu.memory_space<vmem>>, %arg4: memref<1x896xf32, #tpu.memory_space<vmem>>, %arg5: memref<2x16xf32, #tpu.memory_space<vmem>>, %arg6: memref<2x128xf32, #tpu.memory_space<vmem>>) attributes {dimension_semantics = [#tpu.dimension_semantics<parallel>], iteration_bounds = array<i64: 1>, scalar_prefetch = 0 : i64, scratch_operands = 0 : i64, tpu.core_type = #tpu.core_type<tc>, window_params = [{transform_indices = @transform_0, window_bounds = array<i64: 16, 128>}, {pipeline_mode = #tpu.pipeline_mode<synchronous>, transform_indices = @transform_1, window_bounds = array<i64: 128, 640>}, {pipeline_mode = #tpu.pipeline_mode<synchronous>, transform_indices = @transform_2, window_bounds = array<i64: 128, 128>}, {pipeline_mode = #tpu.pipeline_mode<synchronous>, transform_indices = @transform_3, window_bounds = array<i64: 1, 896>}, {pipeline_mode = #tpu.pipeline_mode<synchronous>, transform_indices = @transform_4, window_bounds = array<i64: 2, 16>}, {transform_indices = @transform_5, window_bounds = array<i64: 2, 128>}]} {
    %c0 = arith.constant 0 : index
    %c0_0 = arith.constant 0 : index
    %0 = vector.load %arg1[%c0, %c0_0] : memref<16x128xf32, #tpu.memory_space<vmem>>, vector<16x128xf32>
    %c0_1 = arith.constant 0 : index
    %c0_2 = arith.constant 0 : index
    %1 = vector.load %arg5[%c0_1, %c0_2] : memref<2x16xf32, #tpu.memory_space<vmem>>, vector<2x16xf32>
    %c0_3 = arith.constant 0 : index
    %c0_4 = arith.constant 0 : index
    %2 = vector.load %arg2[%c0_3, %c0_4] : memref<128x640xf32, #tpu.memory_space<vmem>>, vector<128x256xf32>
    %c0_5 = arith.constant 0 : index
    %c256 = arith.constant 256 : index
    %3 = vector.load %arg2[%c0_5, %c256] : memref<128x640xf32, #tpu.memory_space<vmem>>, vector<128x128xf32>
    %c0_6 = arith.constant 0 : index
    %c384 = arith.constant 384 : index
    %4 = vector.load %arg2[%c0_6, %c384] : memref<128x640xf32, #tpu.memory_space<vmem>>, vector<128x128xf32>
    %c0_7 = arith.constant 0 : index
    %c512 = arith.constant 512 : index
    %5 = vector.load %arg2[%c0_7, %c512] : memref<128x640xf32, #tpu.memory_space<vmem>>, vector<128x128xf32>
    %c0_8 = arith.constant 0 : index
    %c0_9 = arith.constant 0 : index
    %6 = vector.load %arg4[%c0_8, %c0_9] : memref<1x896xf32, #tpu.memory_space<vmem>>, vector<1x256xf32>
    %c0_10 = arith.constant 0 : index
    %c256_11 = arith.constant 256 : index
    %7 = vector.load %arg4[%c0_10, %c256_11] : memref<1x896xf32, #tpu.memory_space<vmem>>, vector<1x128xf32>
    %c0_12 = arith.constant 0 : index
    %c384_13 = arith.constant 384 : index
    %8 = vector.load %arg4[%c0_12, %c384_13] : memref<1x896xf32, #tpu.memory_space<vmem>>, vector<1x128xf32>
    %c0_14 = arith.constant 0 : index
    %c512_15 = arith.constant 512 : index
    %9 = vector.load %arg4[%c0_14, %c512_15] : memref<1x896xf32, #tpu.memory_space<vmem>>, vector<1x128xf32>
    %c0_16 = arith.constant 0 : index
    %c640 = arith.constant 640 : index
    %10 = vector.load %arg4[%c0_16, %c640] : memref<1x896xf32, #tpu.memory_space<vmem>>, vector<1x128xf32>
    %c0_17 = arith.constant 0 : index
    %c768 = arith.constant 768 : index
    %11 = vector.load %arg4[%c0_17, %c768] : memref<1x896xf32, #tpu.memory_space<vmem>>, vector<1x128xf32>
    %cst = arith.constant dense<0.000000e+00> : vector<16x256xf32>
    %12 = tpu.matmul %0, %2, %cst {dimension_numbers = #tpu.dot_dimension_numbers<[1], [0], [0], [1], [0, 0, 1, 1], [], []>} : vector<16x128xf32>, vector<128x256xf32>, vector<16x256xf32> -> vector<16x256xf32>
    %13 = vector.broadcast %6 : vector<1x256xf32> to vector<16x256xf32>
    %14 = arith.addf %12, %13 : vector<16x256xf32>
    %15 = vector.extract_strided_slice %14 {offsets = [0, 0], sizes = [16, 128], strides = [1, 1]} : vector<16x256xf32> to vector<16x128xf32>
    %16 = vector.extract_strided_slice %14 {offsets = [0, 128], sizes = [16, 128], strides = [1, 1]} : vector<16x256xf32> to vector<16x128xf32>
    %cst_18 = arith.constant dense<0.000000e+00> : vector<16x128xf32>
    %17 = tpu.matmul %15, %3, %cst_18 {dimension_numbers = #tpu.dot_dimension_numbers<[1], [0], [0], [1], [0, 0, 1, 1], [], []>} : vector<16x128xf32>, vector<128x128xf32>, vector<16x128xf32> -> vector<16x128xf32>
    %cst_19 = arith.constant dense<0xFF800000> : vector<128xf32>
    %18 = vector.multi_reduction <maximumf>, %17, %cst_19 [0] : vector<16x128xf32> to vector<128xf32>
    %19 = vector.shape_cast %18 : vector<128xf32> to vector<1x128xf32>
    %20 = vector.broadcast %19 : vector<1x128xf32> to vector<16x128xf32>
    %21 = arith.subf %17, %20 : vector<16x128xf32>
    %22 = math.exp %21 : vector<16x128xf32>
    %23 = arith.mulf %22, %16 : vector<16x128xf32>
    %cst_20 = arith.constant dense<0.000000e+00> : vector<2x128xf32>
    %24 = tpu.matmul %1, %23, %cst_20 {dimension_numbers = #tpu.dot_dimension_numbers<[1], [0], [0], [1], [0, 0, 1, 1], [], []>} : vector<2x16xf32>, vector<16x128xf32>, vector<2x128xf32> -> vector<2x128xf32>
    %cst_21 = arith.constant dense<0.000000e+00> : vector<2x128xf32>
    %25 = tpu.matmul %1, %22, %cst_21 {dimension_numbers = #tpu.dot_dimension_numbers<[1], [0], [0], [1], [0, 0, 1, 1], [], []>} : vector<2x16xf32>, vector<16x128xf32>, vector<2x128xf32> -> vector<2x128xf32>
    %26 = tpu.reciprocal %25 {approx = true} : vector<2x128xf32> -> vector<2x128xf32>
    %27 = arith.mulf %24, %26 : vector<2x128xf32>
    %cst_22 = arith.constant dense<0.000000e+00> : vector<2x128xf32>
    %28 = tpu.matmul %27, %4, %cst_22 {dimension_numbers = #tpu.dot_dimension_numbers<[1], [0], [0], [1], [0, 0, 1, 1], [], []>} : vector<2x128xf32>, vector<128x128xf32>, vector<2x128xf32> -> vector<2x128xf32>
    %29 = vector.broadcast %7 : vector<1x128xf32> to vector<2x128xf32>
    %30 = arith.addf %28, %29 : vector<2x128xf32>
    %cst_23 = arith.constant dense<0.000000e+00> : vector<2xf32>
    %31 = vector.multi_reduction <add>, %30, %cst_23 [1] : vector<2x128xf32> to vector<2xf32>
    %32 = vector.shape_cast %31 : vector<2xf32> to vector<2x1xf32>
    %cst_24 = arith.constant 3.125000e-02 : f32
    %33 = vector.broadcast %cst_24 : f32 to vector<2x1xf32>
    %34 = arith.mulf %32, %33 : vector<2x1xf32>
    %35 = arith.mulf %30, %30 : vector<2x128xf32>
    %cst_25 = arith.constant dense<0.000000e+00> : vector<2xf32>
    %36 = vector.multi_reduction <add>, %35, %cst_25 [1] : vector<2x128xf32> to vector<2xf32>
    %37 = vector.shape_cast %36 : vector<2xf32> to vector<2x1xf32>
    %cst_26 = arith.constant 3.125000e-02 : f32
    %38 = vector.broadcast %cst_26 : f32 to vector<2x1xf32>
    %39 = arith.mulf %37, %38 : vector<2x1xf32>
    %40 = arith.mulf %34, %34 : vector<2x1xf32>
    %41 = arith.subf %39, %40 : vector<2x1xf32>
    %42 = vector.broadcast %34 : vector<2x1xf32> to vector<2x128xf32>
    %43 = arith.subf %30, %42 : vector<2x128xf32>
    %cst_27 = arith.constant 9.99999997E-7 : f32
    %44 = vector.broadcast %cst_27 : f32 to vector<2x1xf32>
    %45 = arith.addf %41, %44 : vector<2x1xf32>
    %46 = math.rsqrt %45 : vector<2x1xf32>
    %47 = vector.broadcast %46 : vector<2x1xf32> to vector<2x128xf32>
    %48 = arith.mulf %43, %47 : vector<2x128xf32>
    %49 = vector.broadcast %8 : vector<1x128xf32> to vector<2x128xf32>
    %50 = arith.mulf %48, %49 : vector<2x128xf32>
    %51 = vector.broadcast %9 : vector<1x128xf32> to vector<2x128xf32>
    %52 = arith.addf %50, %51 : vector<2x128xf32>
    %cst_28 = arith.constant dense<0.000000e+00> : vector<2x128xf32>
    %53 = tpu.matmul %52, %5, %cst_28 {dimension_numbers = #tpu.dot_dimension_numbers<[1], [0], [0], [1], [0, 0, 1, 1], [], []>} : vector<2x128xf32>, vector<128x128xf32>, vector<2x128xf32> -> vector<2x128xf32>
    %54 = vector.broadcast %10 : vector<1x128xf32> to vector<2x128xf32>
    %55 = arith.addf %53, %54 : vector<2x128xf32>
    %cst_29 = arith.constant 5.000000e-01 : f32
    %56 = vector.broadcast %cst_29 : f32 to vector<2x128xf32>
    %57 = arith.mulf %56, %55 : vector<2x128xf32>
    %cst_30 = arith.constant 4.471500e-02 : f32
    %58 = vector.broadcast %cst_30 : f32 to vector<2x128xf32>
    %59 = arith.mulf %58, %55 : vector<2x128xf32>
    %60 = arith.mulf %59, %55 : vector<2x128xf32>
    %61 = arith.mulf %60, %55 : vector<2x128xf32>
    %62 = arith.addf %55, %61 : vector<2x128xf32>
    %cst_31 = arith.constant 0.797884583 : f32
    %63 = vector.broadcast %cst_31 : f32 to vector<2x128xf32>
    %64 = arith.mulf %63, %62 : vector<2x128xf32>
    %65 = math.tanh %64 : vector<2x128xf32>
    %cst_32 = arith.constant 1.000000e+00 : f32
    %66 = vector.broadcast %cst_32 : f32 to vector<2x128xf32>
    %67 = arith.addf %66, %65 : vector<2x128xf32>
    %68 = arith.mulf %57, %67 : vector<2x128xf32>
    %c0_33 = arith.constant 0 : index
    %c0_34 = arith.constant 0 : index
    %69 = vector.load %arg3[%c0_33, %c0_34] : memref<128x128xf32, #tpu.memory_space<vmem>>, vector<128x128xf32>
    %cst_35 = arith.constant dense<0.000000e+00> : vector<2x128xf32>
    %70 = tpu.matmul %68, %69, %cst_35 {dimension_numbers = #tpu.dot_dimension_numbers<[1], [0], [0], [1], [0, 0, 1, 1], [], []>} : vector<2x128xf32>, vector<128x128xf32>, vector<2x128xf32> -> vector<2x128xf32>
    %71 = vector.broadcast %11 : vector<1x128xf32> to vector<2x128xf32>
    %72 = arith.addf %70, %71 : vector<2x128xf32>
    %73 = arith.addf %72, %30 : vector<2x128xf32>
    %c0_36 = arith.constant 0 : index
    %c0_37 = arith.constant 0 : index
    %74 = vector.load %arg6[%c0_36, %c0_37] : memref<2x128xf32, #tpu.memory_space<vmem>>, vector<2x128xf32>
    tpu.vector_store %arg6[%c0_36, %c0_37], %73 {strides = array<i32>} : memref<2x128xf32, #tpu.memory_space<vmem>>, vector<2x128xf32>,
    return
  }
  func.func @transform_0(%arg0: i32) -> (i32, i32) {
    %c0_i32 = arith.constant 0 : i32
    %c0_i32_0 = arith.constant 0 : i32
    return %arg0, %c0_i32 : i32, i32
  }
  func.func @transform_1(%arg0: i32) -> (i32, i32) {
    %c0_i32 = arith.constant 0 : i32
    %c0_i32_0 = arith.constant 0 : i32
    %c0_i32_1 = arith.constant 0 : i32
    return %c0_i32, %c0_i32_0 : i32, i32
  }
  func.func @transform_2(%arg0: i32) -> (i32, i32) {
    %c0_i32 = arith.constant 0 : i32
    %c0_i32_0 = arith.constant 0 : i32
    %c0_i32_1 = arith.constant 0 : i32
    return %c0_i32, %c0_i32_0 : i32, i32
  }
  func.func @transform_3(%arg0: i32) -> (i32, i32) {
    %c0_i32 = arith.constant 0 : i32
    %c0_i32_0 = arith.constant 0 : i32
    %c0_i32_1 = arith.constant 0 : i32
    return %c0_i32, %c0_i32_0 : i32, i32
  }
  func.func @transform_4(%arg0: i32) -> (i32, i32) {
    %c0_i32 = arith.constant 0 : i32
    %c0_i32_0 = arith.constant 0 : i32
    %c0_i32_1 = arith.constant 0 : i32
    return %c0_i32, %c0_i32_0 : i32, i32
  }
  func.func @transform_5(%arg0: i32) -> (i32, i32) {
    %c0_i32 = arith.constant 0 : i32
    %c0_i32_0 = arith.constant 0 : i32
    return %arg0, %c0_i32 : i32, i32
  }
}

</mosaic_0001>

<llo_original>
// kernel: siglip_pooling_head.1
$region0: #{siglip_pooling_head.1}
  #allocation0 [shape = 'u32[]', space=smem, size = 0x4, offset = 0x4, fixed_abs, tag = 'smem constant byte address 0x4 - core index']
  #allocation1 [shape = 'u32[144,128]{1,0:T(1,128)}', space=vmem, size = 0x12000, scoped, tag = 'internal scratch']
  %s0 = inlined_call_operand.vmem [shape: f32[16,128], index: 0, kind: input, shape index: {}]
  %s1 = inlined_call_operand.hbm [shape: f32[128,640], index: 1, kind: input, shape index: {}]
  %s2 = inlined_call_operand.hbm [shape: f32[128,128], index: 2, kind: input, shape index: {}]
  %s3 = inlined_call_operand.vmem [shape: f32[1,896], index: 3, kind: input, shape index: {}]
  %s4 = inlined_call_operand.vmem [shape: f32[2,16], index: 4, kind: input, shape index: {}]
  %s5 = inlined_call_operand.hbm [shape: f32[2,128], index: 5, kind: output, shape index: {}]
  %s6 = sld [smem:[#allocation0]]
  $region38: #{siglip_pooling_head.1} parent=0
    _
  %s8 = ssub.s32 1, %s6
  %s9 = scalar_select 0, %s8, %s6
  $region1: #{siglip_pooling_head.1} parent=0
    #allocation2 [shape = 'u8[327680]{0}', space=vmem, size = 0x50000, scoped, tag = 'input window, operand 1, single buffered']
    #allocation3 [shape = 's32[1]{0}', space=sflag, size = 0x4, scoped, tag = 'scoped memory for siglip_pooling_head.1']
    #allocation4 [shape = 's32[1]{0}', space=sflag, size = 0x4, scoped, tag = 'scoped memory for siglip_pooling_head.1']
    #allocation5 [shape = 'u8[65536]{0}', space=vmem, size = 0x10000, scoped, tag = 'input window, operand 2, single buffered']
    #allocation6 [shape = 's32[1]{0}', space=sflag, size = 0x4, scoped, tag = 'scoped memory for siglip_pooling_head.1']
    #allocation7 [shape = 'u8[1024]{0}', space=vmem, size = 0x400, scoped, tag = 'output window, operand 0, single buffered']
    %10 = vsyncpa [#allocation3], 0
    %11 = vsyncpa [#allocation6], 0
    %12 = vsyncpa [#allocation4], 0
    // Predicated region
    $region2: #{siglip_pooling_head.1} parent=1 // pred_check
      _
    $region3: #{siglip_pooling_head.1} parent=1 // pred_check_branch
      %14 = sbr.rel (0) target = $region5
    $region4: #{siglip_pooling_head.1} parent=1 // pred_region
      _
    $region5: #{siglip_pooling_head.1} parent=1 // pred_fallthru
      _
    // Predicated region
    $region6: #{siglip_pooling_head.1} parent=1 // pred_check
      _
    $region7: #{siglip_pooling_head.1} parent=1 // pred_check_branch
      %16 = sbr.rel (0) target = $region9
    $region8: #{siglip_pooling_head.1} parent=1 // pred_region
      %s18 = ssub.s32 10240, 10240
      %19 = vsyncadd [#allocation3], %s18
      %s20 = sshll.u32 [#allocation2], 4
      %s21 = int_to_ptr.vmem [resolvable:$true] %s20
      %26 = dma.hbm_to_vmem [thread:$0]  %s1, 10240, %s21, [#allocation3], 640, 640, 40
    $region9: #{siglip_pooling_head.1} parent=1 // pred_fallthru
      _
    // Predicated region
    $region10: #{siglip_pooling_head.1} parent=1 // pred_check
      _
    $region11: #{siglip_pooling_head.1} parent=1 // pred_check_branch
      %28 = sbr.rel (0) target = $region13
    $region12: #{siglip_pooling_head.1} parent=1 // pred_region
      %s30 = ssub.s32 2048, 2048
      %31 = vsyncadd [#allocation6], %s30
      %s32 = sshll.u32 [#allocation5], 4
      %s33 = int_to_ptr.vmem [resolvable:$true] %s32
      %38 = dma.hbm_to_vmem [thread:$0]  %s2, 2048, %s33, [#allocation6], 128, 128, 8
    $region13: #{siglip_pooling_head.1} parent=1 // pred_fallthru
      _
    // Predicated region
    $region14: #{siglip_pooling_head.1} parent=1 // pred_check
      _
    $region15: #{siglip_pooling_head.1} parent=1 // pred_check_branch
      %40 = sbr.rel (0) target = $region17
    $region16: #{siglip_pooling_head.1} parent=1 // pred_region
      _
    $region17: #{siglip_pooling_head.1} parent=1 // pred_fallthru
      _
    // Predicated region
    $region18: #{siglip_pooling_head.1} parent=1 // pred_check
      _
    $region19: #{siglip_pooling_head.1} parent=1 // pred_check_branch
      %42 = sbr.rel (0) target = $region21
    $region20: #{siglip_pooling_head.1} parent=1 // pred_region
      _
    $region21: #{siglip_pooling_head.1} parent=1 // pred_fallthru
      _
    // Predicated region
    $region22: #{siglip_pooling_head.1} parent=1 // pred_check
      _
    $region23: #{siglip_pooling_head.1} parent=1 // pred_check_branch
      %44 = sbr.rel (0) target = $region25
    $region24: #{siglip_pooling_head.1} parent=1 // pred_region
      %45 = dma.done [#allocation3], 10240
    $region25: #{siglip_pooling_head.1} parent=1 // pred_fallthru
      _
    // Predicated region
    $region26: #{siglip_pooling_head.1} parent=1 // pred_check
      _
    $region27: #{siglip_pooling_head.1} parent=1 // pred_check_branch
      %47 = sbr.rel (0) target = $region29
    $region28: #{siglip_pooling_head.1} parent=1 // pred_region
      %48 = dma.done [#allocation6], 2048
    $region29: #{siglip_pooling_head.1} parent=1 // pred_fallthru
      _
    %v49 = vld [vmem:[%s0] sm:$0xff]
    %v50 = vld [vmem:[%s0 + $0x8] sm:$0xff]
    %v51 = vld [vmem:[%s4] sm:$0x3]
    %v52 = vld [vmem:[#allocation2] sm:$0xff]
    %v53 = vld [vmem:[#allocation2 + $0x8] sm:$0xff]
    %v54 = vld [vmem:[#allocation2 + $0x28] sm:$0xff]
    %v55 = vld [vmem:[#allocation2 + $0x30] sm:$0xff]
    %v56 = vld [vmem:[#allocation2 + $0x50] sm:$0xff]
    %v57 = vld [vmem:[#allocation2 + $0x58] sm:$0xff]
    %v58 = vld [vmem:[#allocation2 + $0x78] sm:$0xff]
    %v59 = vld [vmem:[#allocation2 + $0x80] sm:$0xff]
    %v60 = vld [vmem:[#allocation2 + $0xa0] sm:$0xff]
    %v61 = vld [vmem:[#allocation2 + $0xa8] sm:$0xff]
    %v62 = vld [vmem:[#allocation2 + $0xc8] sm:$0xff]
    %v63 = vld [vmem:[#allocation2 + $0xd0] sm:$0xff]
    %v64 = vld [vmem:[#allocation2 + $0xf0] sm:$0xff]
    %v65 = vld [vmem:[#allocation2 + $0xf8] sm:$0xff]
    %v66 = vld [vmem:[#allocation2 + $0x118] sm:$0xff]
    %v67 = vld [vmem:[#allocation2 + $0x120] sm:$0xff]
    %v68 = vld [vmem:[#allocation2 + $0x140] sm:$0xff]
    %v69 = vld [vmem:[#allocation2 + $0x148] sm:$0xff]
    %v70 = vld [vmem:[#allocation2 + $0x168] sm:$0xff]
    %v71 = vld [vmem:[#allocation2 + $0x170] sm:$0xff]
    %v72 = vld [vmem:[#allocation2 + $0x190] sm:$0xff]
    %v73 = vld [vmem:[#allocation2 + $0x198] sm:$0xff]
    %v74 = vld [vmem:[#allocation2 + $0x1b8] sm:$0xff]
    %v75 = vld [vmem:[#allocation2 + $0x1c0] sm:$0xff]
    %v76 = vld [vmem:[#allocation2 + $0x1e0] sm:$0xff]
    %v77 = vld [vmem:[#allocation2 + $0x1e8] sm:$0xff]
    %v78 = vld [vmem:[#allocation2 + $0x208] sm:$0xff]
    %v79 = vld [vmem:[#allocation2 + $0x210] sm:$0xff]
    %v80 = vld [vmem:[#allocation2 + $0x230] sm:$0xff]
    %v81 = vld [vmem:[#allocation2 + $0x238] sm:$0xff]
    %v82 = vld [vmem:[#allocation2 + $0x258] sm:$0xff]
    %v83 = vld [vmem:[#allocation2 + $0x260] sm:$0xff]
    %v84 = vld [vmem:[#allocation2 + $0x10] sm:$0xff]
    %v85 = vld [vmem:[#allocation2 + $0x38] sm:$0xff]
    %v86 = vld [vmem:[#allocation2 + $0x60] sm:$0xff]
    %v87 = vld [vmem:[#allocation2 + $0x88] sm:$0xff]
    %v88 = vld [vmem:[#allocation2 + $0xb0] sm:$0xff]
    %v89 = vld [vmem:[#allocation2 + $0xd8] sm:$0xff]
    %v90 = vld [vmem:[#allocation2 + $0x100] sm:$0xff]
    %v91 = vld [vmem:[#allocation2 + $0x128] sm:$0xff]
    %v92 = vld [vmem:[#allocation2 + $0x150] sm:$0xff]
    %v93 = vld [vmem:[#allocation2 + $0x178] sm:$0xff]
    %v94 = vld [vmem:[#allocation2 + $0x1a0] sm:$0xff]
    %v95 = vld [vmem:[#allocation2 + $0x1c8] sm:$0xff]
    %v96 = vld [vmem:[#allocation2 + $0x1f0] sm:$0xff]
    %v97 = vld [vmem:[#allocation2 + $0x218] sm:$0xff]
    %v98 = vld [vmem:[#allocation2 + $0x240] sm:$0xff]
    %v99 = vld [vmem:[#allocation2 + $0x268] sm:$0xff]
    %v100 = vld [vmem:[#allocation2 + $0x18] sm:$0xff]
    %v101 = vld [vmem:[#allocation2 + $0x40] sm:$0xff]
    %v102 = vld [vmem:[#allocation2 + $0x68] sm:$0xff]
    %v103 = vld [vmem:[#allocation2 + $0x90] sm:$0xff]
    %v104 = vld [vmem:[#allocation2 + $0xb8] sm:$0xff]
    %v105 = vld [vmem:[#allocation2 + $0xe0] sm:$0xff]
    %v106 = vld [vmem:[#allocation2 + $0x108] sm:$0xff]
    %v107 = vld [vmem:[#allocation2 + $0x130] sm:$0xff]
    %v108 = vld [vmem:[#allocation2 + $0x158] sm:$0xff]
    %v109 = vld [vmem:[#allocation2 + $0x180] sm:$0xff]
    %v110 = vld [vmem:[#allocation2 + $0x1a8] sm:$0xff]
    %v111 = vld [vmem:[#allocation2 + $0x1d0] sm:$0xff]
    %v112 = vld [vmem:[#allocation2 + $0x1f8] sm:$0xff]
    %v113 = vld [vmem:[#allocation2 + $0x220] sm:$0xff]
    %v114 = vld [vmem:[#allocation2 + $0x248] sm:$0xff]
    %v115 = vld [vmem:[#allocation2 + $0x270] sm:$0xff]
    %v116 = vld [vmem:[#allocation2 + $0x20] sm:$0xff]
    %v117 = vld [vmem:[#allocation2 + $0x48] sm:$0xff]
    %v118 = vld [vmem:[#allocation2 + $0x70] sm:$0xff]
    %v119 = vld [vmem:[#allocation2 + $0x98] sm:$0xff]
    %v120 = vld [vmem:[#allocation2 + $0xc0] sm:$0xff]
    %v121 = vld [vmem:[#allocation2 + $0xe8] sm:$0xff]
    %v122 = vld [vmem:[#allocation2 + $0x110] sm:$0xff]
    %v123 = vld [vmem:[#allocation2 + $0x138] sm:$0xff]
    %v124 = vld [vmem:[#allocation2 + $0x160] sm:$0xff]
    %v125 = vld [vmem:[#allocation2 + $0x188] sm:$0xff]
    %v126 = vld [vmem:[#allocation2 + $0x1b0] sm:$0xff]
    %v127 = vld [vmem:[#allocation2 + $0x1d8] sm:$0xff]
    %v128 = vld [vmem:[#allocation2 + $0x200] sm:$0xff]
    %v129 = vld [vmem:[#allocation2 + $0x228] sm:$0xff]
    %v130 = vld [vmem:[#allocation2 + $0x250] sm:$0xff]
    %v131 = vld [vmem:[#allocation2 + $0x278] sm:$0xff]
    %v132 = vld [vmem:[%s3] sm:$0x3]
    %v133 = vld [vmem:[%s3 + $0x2] sm:$0x1]
    %v134 = vld [vmem:[%s3 + $0x3] sm:$0x1]
    %v135 = vld [vmem:[%s3 + $0x4] sm:$0x1]
    %v136 = vld [vmem:[%s3 + $0x5] sm:$0x1]
    %v137 = vld [vmem:[%s3 + $0x6] sm:$0x1]
    %v139 = vlaneseq
    %v140 = vshrl.u32 %v139, 7
    %v141 = vsub.s32 0, %v140
    %v142 = vrot.slane %v132, %v141
    %v143 = vlaneseq
    %v144 = vshrl.u32 %v143, 7
    %v145 = vsub.s32 1, %v144
    %v146 = vrot.slane %v132, %v145
    %149 = vmatprep.subr.mxu0 %v53
    %150 = vmatpush1.msra.mxu0 %v52
    %151 = vmatprep.subr.mxu0 %v55
    %152 = vmatpush1.msra.mxu0 %v54
    %153 = vmatprep.subr.mxu0 %v57
    %154 = vmatpush1.msra.mxu0 %v56
    %155 = vmatprep.subr.mxu0 %v59
    %156 = vmatpush1.msra.mxu0 %v58
    %157 = vmatprep.subr.mxu0 %v61
    %158 = vmatpush1.msra.mxu0 %v60
    %159 = vmatprep.subr.mxu0 %v63
    %160 = vmatpush1.msra.mxu0 %v62
    %161 = vmatprep.subr.mxu0 %v65
    %162 = vmatpush1.msra.mxu0 %v64
    %163 = vmatprep.subr.mxu0 %v67
    %164 = vmatpush1.msra.mxu0 %v66
    %165 = vmatprep.subr.mxu0 %v69
    %166 = vmatpush1.msra.mxu0 %v68
    %167 = vmatprep.subr.mxu0 %v71
    %168 = vmatpush1.msra.mxu0 %v70
    %169 = vmatprep.subr.mxu0 %v73
    %170 = vmatpush1.msra.mxu0 %v72
    %171 = vmatprep.subr.mxu0 %v75
    %172 = vmatpush1.msra.mxu0 %v74
    %173 = vmatprep.subr.mxu0 %v77
    %174 = vmatpush1.msra.mxu0 %v76
    %175 = vmatprep.subr.mxu0 %v79
    %176 = vmatpush1.msra.mxu0 %v78
    %177 = vmatprep.subr.mxu0 %v81
    %178 = vmatpush1.msra.mxu0 %v80
    %179 = vmatprep.subr.mxu0 %v83
    %180 = vmatpush1.msra.mxu0 %v82
    %181 = vmatprep.subr.mxu0 0.0
    %182 = vmatpush1.msra.mxu0 0.0
    %183 = vmatprep.subr.mxu0 0.0
    %184 = vmatpush1.msra.mxu0 0.0
    %185 = vmatprep.subr.mxu0 0.0
    %186 = vmatpush1.msra.mxu0 0.0
    %187 = vmatprep.subr.mxu0 0.0
    %188 = vmatpush1.msra.mxu0 0.0
    %189 = vmatprep.subr.mxu0 0.0
    %190 = vmatpush1.msra.mxu0 0.0
    %191 = vmatprep.subr.mxu0 0.0
    %192 = vmatpush1.msra.mxu0 0.0
    %193 = vmatprep.subr.mxu0 0.0
    %194 = vmatpush1.msra.mxu0 0.0
    %195 = vmatprep.subr.mxu0 0.0
    %196 = vmatpush1.msra.mxu0 0.0
    %197 = vmatprep.subr.mxu0 0.0
    %198 = vmatpush1.msra.mxu0 0.0
    %199 = vmatprep.subr.mxu0 0.0
    %200 = vmatpush1.msra.mxu0 0.0
    %201 = vmatprep.subr.mxu0 0.0
    %202 = vmatpush1.msra.mxu0 0.0
    %203 = vmatprep.subr.mxu0 0.0
    %204 = vmatpush1.msra.mxu0 0.0
    %205 = vmatprep.subr.mxu0 0.0
    %206 = vmatpush1.msra.mxu0 0.0
    %207 = vmatprep.subr.mxu0 0.0
    %208 = vmatpush1.msra.mxu0 0.0
    %209 = vmatprep.subr.mxu0 0.0
    %210 = vmatpush1.msra.mxu0 0.0
    %211 = vmatprep.subr.mxu0 0.0
    %212 = vmatpush1.msra.mxu0 0.0
    %213 = vmatprep.mubr.f32.mxu0 0.0
    %214 = vmatmul.mubr.f32.gmra.mrb[0].mxu0 %v49
    %v215 = vpop.f32.mrb[0].mxu0
    %v216 = vadd.f32 %v142, %v215
    %v217 = vpop.f32.mrb[0].mxu0
    %v218 = vadd.f32 %v146, %v217
    %219 = vmatprep.mubr.f32.mxu0 0.0
    %220 = vmatmul.mubr.f32.gmra.mrb[0].mxu0 %v50
    %v221 = vpop.f32.mrb[0].mxu0
    %v222 = vadd.f32 %v142, %v221
    %v223 = vpop.f32.mrb[0].mxu0
    %v224 = vadd.f32 %v146, %v223
    %225 = vdwg.mxu0
    %226 = vmatprep.subr.mxu0 0.0
    %227 = vmatpush1.msra.mxu0 %v84
    %228 = vmatprep.subr.mxu0 0.0
    %229 = vmatpush1.msra.mxu0 %v85
    %230 = vmatprep.subr.mxu0 0.0
    %231 = vmatpush1.msra.mxu0 %v86
    %232 = vmatprep.subr.mxu0 0.0
    %233 = vmatpush1.msra.mxu0 %v87
    %234 = vmatprep.subr.mxu0 0.0
    %235 = vmatpush1.msra.mxu0 %v88
    %236 = vmatprep.subr.mxu0 0.0
    %237 = vmatpush1.msra.mxu0 %v89
    %238 = vmatprep.subr.mxu0 0.0
    %239 = vmatpush1.msra.mxu0 %v90
    %240 = vmatprep.subr.mxu0 0.0
    %241 = vmatpush1.msra.mxu0 %v91
    %242 = vmatprep.subr.mxu0 0.0
    %243 = vmatpush1.msra.mxu0 %v92
    %244 = vmatprep.subr.mxu0 0.0
    %245 = vmatpush1.msra.mxu0 %v93
    %246 = vmatprep.subr.mxu0 0.0
    %247 = vmatpush1.msra.mxu0 %v94
    %248 = vmatprep.subr.mxu0 0.0
    %249 = vmatpush1.msra.mxu0 %v95
    %250 = vmatprep.subr.mxu0 0.0
    %251 = vmatpush1.msra.mxu0 %v96
    %252 = vmatprep.subr.mxu0 0.0
    %253 = vmatpush1.msra.mxu0 %v97
    %254 = vmatprep.subr.mxu0 0.0
    %255 = vmatpush1.msra.mxu0 %v98
    %256 = vmatprep.subr.mxu0 0.0
    %257 = vmatpush1.msra.mxu0 %v99
    %258 = vmatprep.subr.mxu0 0.0
    %259 = vmatpush1.msra.mxu0 0.0
    %260 = vmatprep.subr.mxu0 0.0
    %261 = vmatpush1.msra.mxu0 0.0
    %262 = vmatprep.subr.mxu0 0.0
    %263 = vmatpush1.msra.mxu0 0.0
    %264 = vmatprep.subr.mxu0 0.0
    %265 = vmatpush1.msra.mxu0 0.0
    %266 = vmatprep.subr.mxu0 0.0
    %267 = vmatpush1.msra.mxu0 0.0
    %268 = vmatprep.subr.mxu0 0.0
    %269 = vmatpush1.msra.mxu0 0.0
    %270 = vmatprep.subr.mxu0 0.0
    %271 = vmatpush1.msra.mxu0 0.0
    %272 = vmatprep.subr.mxu0 0.0
    %273 = vmatpush1.msra.mxu0 0.0
    %274 = vmatprep.subr.mxu0 0.0
    %275 = vmatpush1.msra.mxu0 0.0
    %276 = vmatprep.subr.mxu0 0.0
    %277 = vmatpush1.msra.mxu0 0.0
    %278 = vmatprep.subr.mxu0 0.0
    %279 = vmatpush1.msra.mxu0 0.0
    %280 = vmatprep.subr.mxu0 0.0
    %281 = vmatpush1.msra.mxu0 0.0
    %282 = vmatprep.subr.mxu0 0.0
    %283 = vmatpush1.msra.mxu0 0.0
    %284 = vmatprep.subr.mxu0 0.0
    %285 = vmatpush1.msra.mxu0 0.0
    %286 = vmatprep.subr.mxu0 0.0
    %287 = vmatpush1.msra.mxu0 0.0
    %288 = vmatprep.subr.mxu0 0.0
    %289 = vmatpush1.msra.mxu0 0.0
    %290 = vmatprep.mubr.f32.mxu0 0.0
    %291 = vmatmul.mubr.f32.gmra.mrb[0].mxu0 %v216
    %v292 = vpop.f32.mrb[0].mxu0
    %v293 = vadd.f32 0.0, %v292
    %v294 = vpop.f32.mrb[0].mxu0
    %295 = vmatprep.mubr.f32.mxu0 0.0
    %296 = vmatmul.mubr.f32.gmra.mrb[0].mxu0 %v222
    %v297 = vpop.f32.mrb[0].mxu0
    %v298 = vadd.f32 0.0, %v297
    %v299 = vpop.f32.mrb[0].mxu0
    %300 = vdwg.mxu0
    %v301 = vmax.f32 %v293, %v298
    %v302 = vrot.slane %v301, 4
    %v303 = vmax.f32 %v301, %v302
    %v304 = vrot.slane %v303, 2
    %v305 = vmax.f32 %v303, %v304
    %v306 = vrot.slane %v305, 1
    %v307 = vmax.f32 %v305, %v306
    %v308 = vsub.f32 %v293, %v307
    %v309 = vsub.f32 %v298, %v307
    %v310 = vmul.f32 %v308, 1.442695
    %v311 = vpow.pop %v310
    %v312 = vmul.f32 %v309, 1.442695
    %v313 = vpow.pop %v312
    %v314 = vmul.f32 %v311, %v218
    %v315 = vmul.f32 %v313, %v224
    %vm316 = vcmask 130048
    %v318 = vsel %vm316, %v51, 0
    %320 = vmatprep.subr.mxu0 0.0
    %321 = vmatpush1.msra.mxu0 %v314
    %322 = vmatprep.subr.mxu0 0.0
    %323 = vmatpush1.msra.mxu0 %v315
    %324 = vmatprep.subr.mxu0 0.0
    %325 = vmatpush1.msra.mxu0 0.0
    %326 = vmatprep.subr.mxu0 0.0
    %327 = vmatpush1.msra.mxu0 0.0
    %328 = vmatprep.subr.mxu0 0.0
    %329 = vmatpush1.msra.mxu0 0.0
    %330 = vmatprep.subr.mxu0 0.0
    %331 = vmatpush1.msra.mxu0 0.0
    %332 = vmatprep.subr.mxu0 0.0
    %333 = vmatpush1.msra.mxu0 0.0
    %334 = vmatprep.subr.mxu0 0.0
    %335 = vmatpush1.msra.mxu0 0.0
    %336 = vmatprep.subr.mxu0 0.0
    %337 = vmatpush1.msra.mxu0 0.0
    %338 = vmatprep.subr.mxu0 0.0
    %339 = vmatpush1.msra.mxu0 0.0
    %340 = vmatprep.subr.mxu0 0.0
    %341 = vmatpush1.msra.mxu0 0.0
    %342 = vmatprep.subr.mxu0 0.0
    %343 = vmatpush1.msra.mxu0 0.0
    %344 = vmatprep.subr.mxu0 0.0
    %345 = vmatpush1.msra.mxu0 0.0
    %346 = vmatprep.subr.mxu0 0.0
    %347 = vmatpush1.msra.mxu0 0.0
    %348 = vmatprep.subr.mxu0 0.0
    %349 = vmatpush1.msra.mxu0 0.0
    %350 = vmatprep.subr.mxu0 0.0
    %351 = vmatpush1.msra.mxu0 0.0
    %352 = vmatprep.subr.mxu0 0.0
    %353 = vmatpush1.msra.mxu0 0.0
    %354 = vmatprep.subr.mxu0 0.0
    %355 = vmatpush1.msra.mxu0 0.0
    %356 = vmatprep.subr.mxu0 0.0
    %357 = vmatpush1.msra.mxu0 0.0
    %358 = vmatprep.subr.mxu0 0.0
    %359 = vmatpush1.msra.mxu0 0.0
    %360 = vmatprep.subr.mxu0 0.0
    %361 = vmatpush1.msra.mxu0 0.0
    %362 = vmatprep.subr.mxu0 0.0
    %363 = vmatpush1.msra.mxu0 0.0
    %364 = vmatprep.subr.mxu0 0.0
    %365 = vmatpush1.msra.mxu0 0.0
    %366 = vmatprep.subr.mxu0 0.0
    %367 = vmatpush1.msra.mxu0 0.0
    %368 = vmatprep.subr.mxu0 0.0
    %369 = vmatpush1.msra.mxu0 0.0
    %370 = vmatprep.subr.mxu0 0.0
    %371 = vmatpush1.msra.mxu0 0.0
    %372 = vmatprep.subr.mxu0 0.0
    %373 = vmatpush1.msra.mxu0 0.0
    %374 = vmatprep.subr.mxu0 0.0
    %375 = vmatpush1.msra.mxu0 0.0
    %376 = vmatprep.subr.mxu0 0.0
    %377 = vmatpush1.msra.mxu0 0.0
    %378 = vmatprep.subr.mxu0 0.0
    %379 = vmatpush1.msra.mxu0 0.0
    %380 = vmatprep.subr.mxu0 0.0
    %381 = vmatpush1.msra.mxu0 0.0
    %382 = vmatprep.subr.mxu0 0.0
    %383 = vmatpush1.msra.mxu0 0.0
    %384 = vmatprep.mubr.f32.mxu0 0.0
    %385 = vmatmul.mubr.f32.gmra.mrb[0].mxu0 %v318
    %v386 = vpop.f32.mrb[0].mxu0
    %v387 = vadd.f32 0.0, %v386
    %v388 = vpop.f32.mrb[0].mxu0
    %389 = vdwg.mxu0
    %390 = vmatprep.subr.mxu0 0.0
    %391 = vmatpush1.msra.mxu0 %v311
    %392 = vmatprep.subr.mxu0 0.0
    %393 = vmatpush1.msra.mxu0 %v313
    %394 = vmatprep.subr.mxu0 0.0
    %395 = vmatpush1.msra.mxu0 0.0
    %396 = vmatprep.subr.mxu0 0.0
    %397 = vmatpush1.msra.mxu0 0.0
    %398 = vmatprep.subr.mxu0 0.0
    %399 = vmatpush1.msra.mxu0 0.0
    %400 = vmatprep.subr.mxu0 0.0
    %401 = vmatpush1.msra.mxu0 0.0
    %402 = vmatprep.subr.mxu0 0.0
    %403 = vmatpush1.msra.mxu0 0.0
    %404 = vmatprep.subr.mxu0 0.0
    %405 = vmatpush1.msra.mxu0 0.0
    %406 = vmatprep.subr.mxu0 0.0
    %407 = vmatpush1.msra.mxu0 0.0
    %408 = vmatprep.subr.mxu0 0.0
    %409 = vmatpush1.msra.mxu0 0.0
    %410 = vmatprep.subr.mxu0 0.0
    %411 = vmatpush1.msra.mxu0 0.0
    %412 = vmatprep.subr.mxu0 0.0
    %413 = vmatpush1.msra.mxu0 0.0
    %414 = vmatprep.subr.mxu0 0.0
    %415 = vmatpush1.msra.mxu0 0.0
    %416 = vmatprep.subr.mxu0 0.0
    %417 = vmatpush1.msra.mxu0 0.0
    %418 = vmatprep.subr.mxu0 0.0
    %419 = vmatpush1.msra.mxu0 0.0
    %420 = vmatprep.subr.mxu0 0.0
    %421 = vmatpush1.msra.mxu0 0.0
    %422 = vmatprep.subr.mxu0 0.0
    %423 = vmatpush1.msra.mxu0 0.0
    %424 = vmatprep.subr.mxu0 0.0
    %425 = vmatpush1.msra.mxu0 0.0
    %426 = vmatprep.subr.mxu0 0.0
    %427 = vmatpush1.msra.mxu0 0.0
    %428 = vmatprep.subr.mxu0 0.0
    %429 = vmatpush1.msra.mxu0 0.0
    %430 = vmatprep.subr.mxu0 0.0
    %431 = vmatpush1.msra.mxu0 0.0
    %432 = vmatprep.subr.mxu0 0.0
    %433 = vmatpush1.msra.mxu0 0.0
    %434 = vmatprep.subr.mxu0 0.0
    %435 = vmatpush1.msra.mxu0 0.0
    %436 = vmatprep.subr.mxu0 0.0
    %437 = vmatpush1.msra.mxu0 0.0
    %438 = vmatprep.subr.mxu0 0.0
    %439 = vmatpush1.msra.mxu0 0.0
    %440 = vmatprep.subr.mxu0 0.0
    %441 = vmatpush1.msra.mxu0 0.0
    %442 = vmatprep.subr.mxu0 0.0
    %443 = vmatpush1.msra.mxu0 0.0
    %444 = vmatprep.subr.mxu0 0.0
    %445 = vmatpush1.msra.mxu0 0.0
    %446 = vmatprep.subr.mxu0 0.0
    %447 = vmatpush1.msra.mxu0 0.0
    %448 = vmatprep.subr.mxu0 0.0
    %449 = vmatpush1.msra.mxu0 0.0
    %450 = vmatprep.subr.mxu0 0.0
    %451 = vmatpush1.msra.mxu0 0.0
    %452 = vmatprep.subr.mxu0 0.0
    %453 = vmatpush1.msra.mxu0 0.0
    %454 = vmatprep.mubr.f32.mxu0 0.0
    %455 = vmatmul.mubr.f32.gmra.mrb[0].mxu0 %v318
    %v456 = vpop.f32.mrb[0].mxu0
    %v457 = vadd.f32 0.0, %v456
    %v458 = vpop.f32.mrb[0].mxu0
    %459 = vdwg.mxu0
    %v460 = vrcp.pop %v457
    %v461 = vmul.f32 %v387, %v460
    %v463 = vlaneseq
    %v464 = vshrl.u32 %v463, 7
    %v465 = vsub.s32 0, %v464
    %v466 = vrot.slane %v133, %v465
    %468 = vmatprep.subr.mxu0 0.0
    %469 = vmatpush1.msra.mxu0 %v100
    %470 = vmatprep.subr.mxu0 0.0
    %471 = vmatpush1.msra.mxu0 %v101
    %472 = vmatprep.subr.mxu0 0.0
    %473 = vmatpush1.msra.mxu0 %v102
    %474 = vmatprep.subr.mxu0 0.0
    %475 = vmatpush1.msra.mxu0 %v103
    %476 = vmatprep.subr.mxu0 0.0
    %477 = vmatpush1.msra.mxu0 %v104
    %478 = vmatprep.subr.mxu0 0.0
    %479 = vmatpush1.msra.mxu0 %v105
    %480 = vmatprep.subr.mxu0 0.0
    %481 = vmatpush1.msra.mxu0 %v106
    %482 = vmatprep.subr.mxu0 0.0
    %483 = vmatpush1.msra.mxu0 %v107
    %484 = vmatprep.subr.mxu0 0.0
    %485 = vmatpush1.msra.mxu0 %v108
    %486 = vmatprep.subr.mxu0 0.0
    %487 = vmatpush1.msra.mxu0 %v109
    %488 = vmatprep.subr.mxu0 0.0
    %489 = vmatpush1.msra.mxu0 %v110
    %490 = vmatprep.subr.mxu0 0.0
    %491 = vmatpush1.msra.mxu0 %v111
    %492 = vmatprep.subr.mxu0 0.0
    %493 = vmatpush1.msra.mxu0 %v112
    %494 = vmatprep.subr.mxu0 0.0
    %495 = vmatpush1.msra.mxu0 %v113
    %496 = vmatprep.subr.mxu0 0.0
    %497 = vmatpush1.msra.mxu0 %v114
    %498 = vmatprep.subr.mxu0 0.0
    %499 = vmatpush1.msra.mxu0 %v115
    %500 = vmatprep.subr.mxu0 0.0
    %501 = vmatpush1.msra.mxu0 0.0
    %502 = vmatprep.subr.mxu0 0.0
    %503 = vmatpush1.msra.mxu0 0.0
    %504 = vmatprep.subr.mxu0 0.0
    %505 = vmatpush1.msra.mxu0 0.0
    %506 = vmatprep.subr.mxu0 0.0
    %507 = vmatpush1.msra.mxu0 0.0
    %508 = vmatprep.subr.mxu0 0.0
    %509 = vmatpush1.msra.mxu0 0.0
    %510 = vmatprep.subr.mxu0 0.0
    %511 = vmatpush1.msra.mxu0 0.0
    %512 = vmatprep.subr.mxu0 0.0
    %513 = vmatpush1.msra.mxu0 0.0
    %514 = vmatprep.subr.mxu0 0.0
    %515 = vmatpush1.msra.mxu0 0.0
    %516 = vmatprep.subr.mxu0 0.0
    %517 = vmatpush1.msra.mxu0 0.0
    %518 = vmatprep.subr.mxu0 0.0
    %519 = vmatpush1.msra.mxu0 0.0
    %520 = vmatprep.subr.mxu0 0.0
    %521 = vmatpush1.msra.mxu0 0.0
    %522 = vmatprep.subr.mxu0 0.0
    %523 = vmatpush1.msra.mxu0 0.0
    %524 = vmatprep.subr.mxu0 0.0
    %525 = vmatpush1.msra.mxu0 0.0
    %526 = vmatprep.subr.mxu0 0.0
    %527 = vmatpush1.msra.mxu0 0.0
    %528 = vmatprep.subr.mxu0 0.0
    %529 = vmatpush1.msra.mxu0 0.0
    %530 = vmatprep.subr.mxu0 0.0
    %531 = vmatpush1.msra.mxu0 0.0
    %532 = vmatprep.mubr.f32.mxu0 0.0
    %533 = vmatmul.mubr.f32.gmra.mrb[0].mxu0 %v461
    %v534 = vpop.f32.mrb[0].mxu0
    %v535 = vadd.f32 %v466, %v534
    %v536 = vpop.f32.mrb[0].mxu0
    %537 = vdwg.mxu0
    %vm538 = vcmask 1041408
    %v539 = vsel %vm538, %v535, 0.0
    %540 = vadd.xlane.f32.xlu0 %v539
    %v541 = vpop.xlane.xlu0 %540
    %v542 = vmul.f32 %v541, 0.03125
    %v543 = vmul.f32 %v535, %v535
    %v544 = vsel %vm538, %v543, 0.0
    %545 = vadd.xlane.f32.xlu0 %v544
    %v546 = vpop.xlane.xlu0 %545
    %v547 = vmul.f32 %v546, 0.03125
    %v548 = vmul.f32 %v542, %v542
    %v549 = vsub.f32 %v547, %v548
    %v550 = vsub.f32 %v535, %v542
    %v551 = vadd.f32 %v549, 1e-06
    %v552 = vrsqrt.pop %v551
    %v553 = vmul.f32 %v550, %v552
    %v555 = vlaneseq
    %v556 = vshrl.u32 %v555, 7
    %v557 = vsub.s32 0, %v556
    %v558 = vrot.slane %v134, %v557
    %v560 = vmul.f32 %v553, %v558
    %v562 = vlaneseq
    %v563 = vshrl.u32 %v562, 7
    %v564 = vsub.s32 0, %v563
    %v565 = vrot.slane %v135, %v564
    %v567 = vadd.f32 %v560, %v565
    %v569 = vlaneseq
    %v570 = vshrl.u32 %v569, 7
    %v571 = vsub.s32 0, %v570
    %v572 = vrot.slane %v136, %v571
    %574 = vmatprep.subr.mxu0 0.0
    %575 = vmatpush1.msra.mxu0 %v116
    %576 = vmatprep.subr.mxu0 0.0
    %577 = vmatpush1.msra.mxu0 %v117
    %578 = vmatprep.subr.mxu0 0.0
    %579 = vmatpush1.msra.mxu0 %v118
    %580 = vmatprep.subr.mxu0 0.0
    %581 = vmatpush1.msra.mxu0 %v119
    %582 = vmatprep.subr.mxu0 0.0
    %583 = vmatpush1.msra.mxu0 %v120
    %584 = vmatprep.subr.mxu0 0.0
    %585 = vmatpush1.msra.mxu0 %v121
    %586 = vmatprep.subr.mxu0 0.0
    %587 = vmatpush1.msra.mxu0 %v122
    %588 = vmatprep.subr.mxu0 0.0
    %589 = vmatpush1.msra.mxu0 %v123
    %590 = vmatprep.subr.mxu0 0.0
    %591 = vmatpush1.msra.mxu0 %v124
    %592 = vmatprep.subr.mxu0 0.0
    %593 = vmatpush1.msra.mxu0 %v125
    %594 = vmatprep.subr.mxu0 0.0
    %595 = vmatpush1.msra.mxu0 %v126
    %596 = vmatprep.subr.mxu0 0.0
    %597 = vmatpush1.msra.mxu0 %v127
    %598 = vmatprep.subr.mxu0 0.0
    %599 = vmatpush1.msra.mxu0 %v128
    %600 = vmatprep.subr.mxu0 0.0
    %601 = vmatpush1.msra.mxu0 %v129
    %602 = vmatprep.subr.mxu0 0.0
    %603 = vmatpush1.msra.mxu0 %v130
    %604 = vmatprep.subr.mxu0 0.0
    %605 = vmatpush1.msra.mxu0 %v131
    %606 = vmatprep.subr.mxu0 0.0
    %607 = vmatpush1.msra.mxu0 0.0
    %608 = vmatprep.subr.mxu0 0.0
    %609 = vmatpush1.msra.mxu0 0.0
    %610 = vmatprep.subr.mxu0 0.0
    %611 = vmatpush1.msra.mxu0 0.0
    %612 = vmatprep.subr.mxu0 0.0
    %613 = vmatpush1.msra.mxu0 0.0
    %614 = vmatprep.subr.mxu0 0.0
    %615 = vmatpush1.msra.mxu0 0.0
    %616 = vmatprep.subr.mxu0 0.0
    %617 = vmatpush1.msra.mxu0 0.0
    %618 = vmatprep.subr.mxu0 0.0
    %619 = vmatpush1.msra.mxu0 0.0
    %620 = vmatprep.subr.mxu0 0.0
    %621 = vmatpush1.msra.mxu0 0.0
    %622 = vmatprep.subr.mxu0 0.0
    %623 = vmatpush1.msra.mxu0 0.0
    %624 = vmatprep.subr.mxu0 0.0
    %625 = vmatpush1.msra.mxu0 0.0
    %626 = vmatprep.subr.mxu0 0.0
    %627 = vmatpush1.msra.mxu0 0.0
    %628 = vmatprep.subr.mxu0 0.0
    %629 = vmatpush1.msra.mxu0 0.0
    %630 = vmatprep.subr.mxu0 0.0
    %631 = vmatpush1.msra.mxu0 0.0
    %632 = vmatprep.subr.mxu0 0.0
    %633 = vmatpush1.msra.mxu0 0.0
    %634 = vmatprep.subr.mxu0 0.0
    %635 = vmatpush1.msra.mxu0 0.0
    %636 = vmatprep.subr.mxu0 0.0
    %637 = vmatpush1.msra.mxu0 0.0
    %638 = vmatprep.mubr.f32.mxu0 0.0
    %639 = vmatmul.mubr.f32.gmra.mrb[0].mxu0 %v567
    %v640 = vpop.f32.mrb[0].mxu0
    %v641 = vadd.f32 %v572, %v640
    %v642 = vpop.f32.mrb[0].mxu0
    %643 = vdwg.mxu0
    %v644 = vmul.f32 %v641, 0.5
    %v645 = vmul.f32 %v641, 0.044715
    %v646 = vmul.f32 %v645, %v641
    %v647 = vmul.f32 %v646, %v641
    %v648 = vadd.f32 %v641, %v647
    %v649 = vmul.f32 %v648, 0.7978846
    %v650 = vtanh.pop %v649
    %v651 = vadd.f32 %v650, 1.0
    %v652 = vmul.f32 %v644, %v651
    %v653 = vld [vmem:[#allocation5] sm:$0xff]
    %v654 = vld [vmem:[#allocation5 + $0x8] sm:$0xff]
    %v655 = vld [vmem:[#allocation5 + $0x10] sm:$0xff]
    %v656 = vld [vmem:[#allocation5 + $0x18] sm:$0xff]
    %v657 = vld [vmem:[#allocation5 + $0x20] sm:$0xff]
    %v658 = vld [vmem:[#allocation5 + $0x28] sm:$0xff]
    %v659 = vld [vmem:[#allocation5 + $0x30] sm:$0xff]
    %v660 = vld [vmem:[#allocation5 + $0x38] sm:$0xff]
    %v661 = vld [vmem:[#allocation5 + $0x40] sm:$0xff]
    %v662 = vld [vmem:[#allocation5 + $0x48] sm:$0xff]
    %v663 = vld [vmem:[#allocation5 + $0x50] sm:$0xff]
    %v664 = vld [vmem:[#allocation5 + $0x58] sm:$0xff]
    %v665 = vld [vmem:[#allocation5 + $0x60] sm:$0xff]
    %v666 = vld [vmem:[#allocation5 + $0x68] sm:$0xff]
    %v667 = vld [vmem:[#allocation5 + $0x70] sm:$0xff]
    %v668 = vld [vmem:[#allocation5 + $0x78] sm:$0xff]
    %v670 = vlaneseq
    %v671 = vshrl.u32 %v670, 7
    %v672 = vsub.s32 0, %v671
    %v673 = vrot.slane %v137, %v672
    %675 = vmatprep.subr.mxu0 0.0
    %676 = vmatpush1.msra.mxu0 %v653
    %677 = vmatprep.subr.mxu0 0.0
    %678 = vmatpush1.msra.mxu0 %v654
    %679 = vmatprep.subr.mxu0 0.0
    %680 = vmatpush1.msra.mxu0 %v655
    %681 = vmatprep.subr.mxu0 0.0
    %682 = vmatpush1.msra.mxu0 %v656
    %683 = vmatprep.subr.mxu0 0.0
    %684 = vmatpush1.msra.mxu0 %v657
    %685 = vmatprep.subr.mxu0 0.0
    %686 = vmatpush1.msra.mxu0 %v658
    %687 = vmatprep.subr.mxu0 0.0
    %688 = vmatpush1.msra.mxu0 %v659
    %689 = vmatprep.subr.mxu0 0.0
    %690 = vmatpush1.msra.mxu0 %v660
    %691 = vmatprep.subr.mxu0 0.0
    %692 = vmatpush1.msra.mxu0 %v661
    %693 = vmatprep.subr.mxu0 0.0
    %694 = vmatpush1.msra.mxu0 %v662
    %695 = vmatprep.subr.mxu0 0.0
    %696 = vmatpush1.msra.mxu0 %v663
    %697 = vmatprep.subr.mxu0 0.0
    %698 = vmatpush1.msra.mxu0 %v664
    %699 = vmatprep.subr.mxu0 0.0
    %700 = vmatpush1.msra.mxu0 %v665
    %701 = vmatprep.subr.mxu0 0.0
    %702 = vmatpush1.msra.mxu0 %v666
    %703 = vmatprep.subr.mxu0 0.0
    %704 = vmatpush1.msra.mxu0 %v667
    %705 = vmatprep.subr.mxu0 0.0
    %706 = vmatpush1.msra.mxu0 %v668
    %707 = vmatprep.subr.mxu0 0.0
    %708 = vmatpush1.msra.mxu0 0.0
    %709 = vmatprep.subr.mxu0 0.0
    %710 = vmatpush1.msra.mxu0 0.0
    %711 = vmatprep.subr.mxu0 0.0
    %712 = vmatpush1.msra.mxu0 0.0
    %713 = vmatprep.subr.mxu0 0.0
    %714 = vmatpush1.msra.mxu0 0.0
    %715 = vmatprep.subr.mxu0 0.0
    %716 = vmatpush1.msra.mxu0 0.0
    %717 = vmatprep.subr.mxu0 0.0
    %718 = vmatpush1.msra.mxu0 0.0
    %719 = vmatprep.subr.mxu0 0.0
    %720 = vmatpush1.msra.mxu0 0.0
    %721 = vmatprep.subr.mxu0 0.0
    %722 = vmatpush1.msra.mxu0 0.0
    %723 = vmatprep.subr.mxu0 0.0
    %724 = vmatpush1.msra.mxu0 0.0
    %725 = vmatprep.subr.mxu0 0.0
    %726 = vmatpush1.msra.mxu0 0.0
    %727 = vmatprep.subr.mxu0 0.0
    %728 = vmatpush1.msra.mxu0 0.0
    %729 = vmatprep.subr.mxu0 0.0
    %730 = vmatpush1.msra.mxu0 0.0
    %731 = vmatprep.subr.mxu0 0.0
    %732 = vmatpush1.msra.mxu0 0.0
    %733 = vmatprep.subr.mxu0 0.0
    %734 = vmatpush1.msra.mxu0 0.0
    %735 = vmatprep.subr.mxu0 0.0
    %736 = vmatpush1.msra.mxu0 0.0
    %737 = vmatprep.subr.mxu0 0.0
    %738 = vmatpush1.msra.mxu0 0.0
    %739 = vmatprep.mubr.f32.mxu0 0.0
    %740 = vmatmul.mubr.f32.gmra.mrb[0].mxu0 %v652
    %v741 = vpop.f32.mrb[0].mxu0
    %v742 = vadd.f32 %v673, %v741
    %v743 = vpop.f32.mrb[0].mxu0
    %744 = vdwg.mxu0
    %v745 = vadd.f32 %v742, %v535
    %746 = vst [vmem:[#allocation7] sm:$0x3] %v745
    // Predicated region
    $region30: #{siglip_pooling_head.1} parent=1 // pred_check
      _
    $region31: #{siglip_pooling_head.1} parent=1 // pred_check_branch
      %748 = sbr.rel (0) target = $region33
    $region32: #{siglip_pooling_head.1} parent=1 // pred_region
      %s750 = ssub.s32 32, 32
      %751 = vsyncadd [#allocation4], %s750
      %s753 = sshll.u32 [#allocation7], 4
      %s754 = int_to_ptr.vmem [resolvable:$true] %s753
      %756 = dma.vmem_to_hbm [thread:$0]  %s754, 32, %s5, [#allocation4]
    $region33: #{siglip_pooling_head.1} parent=1 // pred_fallthru
      _
    // Predicated region
    $region34: #{siglip_pooling_head.1} parent=1 // pred_check
      _
    $region35: #{siglip_pooling_head.1} parent=1 // pred_check_branch
      %758 = sbr.rel (0) target = $region37
    $region36: #{siglip_pooling_head.1} parent=1 // pred_region
      %759 = dma.done [#allocation4], 32
    $region37: #{siglip_pooling_head.1} parent=1 // pred_fallthru
      _
    %760 = vsyncpa [#allocation3], 1
    %761 = vsyncpa [#allocation6], 1
    %762 = vsyncpa [#allocation4], 1

</llo_original>
